<compile_context>
chip_gen: v7x
topology: tpu7x:2x2x1
jax: 0.10.0
libtpu: 0.0.40
codegen_flags: <defaults>
</compile_context>

<pallas_src>
import jax
import jax.numpy as jnp
from jax import lax
from jax.experimental import pallas as pl
from jax.experimental.pallas import tpu as pltpu


def _round_up(x, m):
    return (x + m - 1) // m * m


def _conv_matmul_kernel(x_ref, w_ref, b_ref, o_ref):
    # x_ref: [tile_m, K], w_ref: [K, Cp], b_ref: [1, Cp], o_ref: [tile_m, Cp]
    acc = jnp.dot(x_ref[...], w_ref[...], preferred_element_type=jnp.float32)
    o_ref[...] = (acc + b_ref[...]).astype(o_ref.dtype)


def _pallas_conv(x_col, w2, b2, tile_m, single_buffer_consts):
    """One lane-dense matmul per (batch, row-tile) grid step."""
    B, M_pad, K = x_col.shape
    Cp = w2.shape[1]
    m_tiles = M_pad // tile_m

    x_spec = pl.BlockSpec((None, tile_m, K), lambda b, m: (b, m, 0))
    o_spec = pl.BlockSpec((None, tile_m, Cp), lambda b, m: (b, m, 0))
    if single_buffer_consts:
        # Constant index maps -> no need to double-buffer the weights/bias.
        w_spec = pl.BlockSpec((K, Cp), lambda b, m: (0, 0), pipeline_mode=pl.Buffered(1))
        b_spec = pl.BlockSpec((1, Cp), lambda b, m: (0, 0), pipeline_mode=pl.Buffered(1))
    else:
        w_spec = pl.BlockSpec((K, Cp), lambda b, m: (0, 0))
        b_spec = pl.BlockSpec((1, Cp), lambda b, m: (0, 0))

    itemsize = 4  # f32
    step_bytes = itemsize * (2 * tile_m * K + K * Cp + Cp + 2 * tile_m * Cp)
    vmem_limit = int(min(max(2 * step_bytes + (4 << 20), 32 << 20), 48 << 20))

    cost = pl.CostEstimate(
        flops=2 * B * M_pad * K * Cp,
        transcendentals=0,
        bytes_accessed=itemsize * (B * M_pad * K + K * Cp + Cp + B * M_pad * Cp),
    )

    return pl.pallas_call(
        _conv_matmul_kernel,
        out_shape=jax.ShapeDtypeStruct((B, M_pad, Cp), x_col.dtype),
        grid=(B, m_tiles),
        in_specs=[x_spec, w_spec, b_spec],
        out_specs=o_spec,
        compiler_params=pltpu.CompilerParams(
            dimension_semantics=("parallel", "parallel"),
            vmem_limit_bytes=vmem_limit,
        ),
        cost_estimate=cost,
    )(x_col, w2, b2)


def downsample(x, w_hwio, bias):
    """Pallas implementation of Downsample.forward (3x3 conv, stride 2, pad 1).

    Args:
      x:      [B, C, H, W]  float32 (NCHW, as in PyTorch).
      w_hwio: [3, 3, C, C]  float32 conv weight in HWIO layout.
      bias:   [C]           float32.
    Returns:
      [B, C, ceil(H/2), ceil(W/2)] float32 (NCHW).
    """
    B, C, H, W = x.shape
    KH, KW, Cin, Cout = w_hwio.shape
    assert (KH, KW) == (3, 3) and Cin == C and Cout == C

    Ho = (H + 1) // 2          # = floor((H + 2*1 - 3)/2) + 1
    Wo = (W + 1) // 2
    M = Ho * Wo
    K = 9 * C
    Cp = _round_up(C, 128)     # lane-dense output stores / full MXU N width

    # NCHW -> NHWC (channels on lanes); zero-pad so every 3x3 stride-2 window is
    # in range (1 zero row/col on top/left, padded size 2*Ho+1 x 2*Wo+1).
    x_nhwc = jnp.transpose(x, (0, 2, 3, 1))
    Hp, Wp = 2 * Ho + 1, 2 * Wo + 1
    x_pad = jnp.pad(x_nhwc, ((0, 0), (1, Hp - H - 1), (1, Wp - W - 1), (0, 0)))

    # Tap fusion (im2col): 9 stride-2 tap slabs concatenated on the channel axis.
    slabs = []
    for kh in range(3):
        for kw in range(3):
            slabs.append(lax.slice(
                x_pad,
                (0, kh, kw, 0),
                (B, kh + 2 * Ho - 1, kw + 2 * Wo - 1, C),
                (1, 2, 2, 1)))                               # [B, Ho, Wo, C]
    x_col = jnp.concatenate(slabs, axis=-1).reshape(B, M, K)  # [B, Ho*Wo, 9C]

    # Row tile: bounded VMEM slab per grid step (~2 MiB activation budget),
    # multiple of 8 sublanes unless it covers the whole row axis.
    if M <= 8:
        tile_m = M
    else:
        tile_m = max(8, min(M, ((2 << 20) // (4 * max(K, Cp))) // 8 * 8, 1024))
    M_pad = _round_up(M, tile_m)
    if M_pad != M:
        x_col = jnp.pad(x_col, ((0, 0), (0, M_pad - M), (0, 0)))

    # Tap-major weights [9*Cin, Cout], Cout (and bias) zero-padded to lane width.
    w2 = jnp.pad(w_hwio.reshape(K, C), ((0, 0), (0, Cp - C)))
    b2 = jnp.pad(bias, (0, Cp - C)).reshape(1, Cp).astype(jnp.float32)

    try:
        out = _pallas_conv(x_col, w2, b2, tile_m, True)
    except Exception:
        # Fallback if this JAX build rejects pipeline_mode=pl.Buffered(1).
        out = _pallas_conv(x_col, w2, b2, tile_m, False)

    # [B, M_pad, Cp] -> [B, C, Ho, Wo]
    out = out[:, :M, :C].reshape(B, Ho, Wo, C)
    return jnp.transpose(out, (0, 3, 1, 2))


def downsample_ref(x, w_hwio, bias):
    """Pure-JAX reference matching the PyTorch module (Conv2d 3x3, s=2, p=1)."""
    out = lax.conv_general_dilated(
        x, w_hwio,
        window_strides=(2, 2),
        padding=((1, 1), (1, 1)),
        dimension_numbers=("NCHW", "HWIO", "NCHW"),
        precision=lax.Precision.HIGHEST,
    )
    return out + bias.reshape(1, -1, 1, 1)


if __name__ == "__main__":
    # Small shapes consistent with the module: x [B, C, H, W] = [2, 4, 16, 16].
    B, C, H, W = 2, 4, 16, 16

    key = jax.random.PRNGKey(0)
    kx, kw, kb = jax.random.split(key, 3)

    x = jax.random.normal(kx, (B, C, H, W), dtype=jnp.float32)
    # Conv2d(dim, dim, 3) parameters, stored in HWIO layout.
    w_hwio = jax.random.normal(kw, (3, 3, C, C), dtype=jnp.float32) * 0.1
    bias = jax.random.normal(kb, (C,), dtype=jnp.float32) * 0.1

    got = jax.block_until_ready(downsample(x, w_hwio, bias))
    want = downsample_ref(x, w_hwio, bias)
    ok = (got.shape == (B, C, (H + 1) // 2, (W + 1) // 2)
          and bool(jnp.allclose(got, want, atol=1e-3, rtol=1e-3)))

    # Odd spatial sizes exercise the ceil(H/2) output path.
    x_odd = jax.random.normal(kx, (1, C, 15, 13), dtype=jnp.float32)
    got_odd = jax.block_until_ready(downsample(x_odd, w_hwio, bias))
    want_odd = downsample_ref(x_odd, w_hwio, bias)
    ok = ok and (got_odd.shape == (1, C, 8, 7)
                 and bool(jnp.allclose(got_odd, want_odd, atol=1e-3, rtol=1e-3)))

    print("KERNEL_OK" if ok else "KERNEL_MISMATCH")
</pallas_src>

<mosaic_0001>
module attributes {stable_mosaic.version = 11 : i64} {
  func.func @_conv_matmul_kernel(%arg0: i32, %arg1: i32, %arg2: memref<1x64x36xf32, #tpu.memory_space<vmem>>, %arg3: memref<36x128xf32, #tpu.memory_space<vmem>>, %arg4: memref<1x128xf32, #tpu.memory_space<vmem>>, %arg5: memref<1x64x128xf32, #tpu.memory_space<vmem>>) attributes {dimension_semantics = [#tpu.dimension_semantics<parallel>, #tpu.dimension_semantics<parallel>], iteration_bounds = array<i64: 2, 1>, scalar_prefetch = 0 : i64, scratch_operands = 0 : i64, tpu.core_type = #tpu.core_type<tc>, window_params = [{transform_indices = @transform_0, window_bounds = array<i64: 1, 64, 36>}, {pipeline_mode = #tpu.pipeline_mode<synchronous>, transform_indices = @transform_1, window_bounds = array<i64: 36, 128>}, {pipeline_mode = #tpu.pipeline_mode<synchronous>, transform_indices = @transform_2, window_bounds = array<i64: 1, 128>}, {transform_indices = @transform_3, window_bounds = array<i64: 1, 64, 128>}]} {
    %c0 = arith.constant 0 : index
    %c0_0 = arith.constant 0 : index
    %c0_1 = arith.constant 0 : index
    %0 = vector.load %arg2[%c0, %c0_0, %c0_1] : memref<1x64x36xf32, #tpu.memory_space<vmem>>, vector<1x64x36xf32>
    %1 = vector.shape_cast %0 : vector<1x64x36xf32> to vector<64x36xf32>
    %c0_2 = arith.constant 0 : index
    %c0_3 = arith.constant 0 : index
    %2 = vector.load %arg3[%c0_2, %c0_3] : memref<36x128xf32, #tpu.memory_space<vmem>>, vector<36x128xf32>
    %cst = arith.constant dense<0.000000e+00> : vector<64x128xf32>
    %3 = tpu.matmul %1, %2, %cst {dimension_numbers = #tpu.dot_dimension_numbers<[1], [0], [0], [1], [0, 0, 1, 1], [], []>} : vector<64x36xf32>, vector<36x128xf32>, vector<64x128xf32> -> vector<64x128xf32>
    %c0_4 = arith.constant 0 : index
    %c0_5 = arith.constant 0 : index
    %4 = vector.load %arg4[%c0_4, %c0_5] : memref<1x128xf32, #tpu.memory_space<vmem>>, vector<1x128xf32>
    %5 = vector.broadcast %4 : vector<1x128xf32> to vector<64x128xf32>
    %6 = arith.addf %3, %5 : vector<64x128xf32>
    %c0_6 = arith.constant 0 : index
    %c0_7 = arith.constant 0 : index
    %c0_8 = arith.constant 0 : index
    %7 = vector.load %arg5[%c0_6, %c0_7, %c0_8] : memref<1x64x128xf32, #tpu.memory_space<vmem>>, vector<1x64x128xf32>
    %8 = vector.shape_cast %7 : vector<1x64x128xf32> to vector<64x128xf32>
    %9 = vector.shape_cast %6 : vector<64x128xf32> to vector<1x64x128xf32>
    tpu.vector_store %arg5[%c0_6, %c0_7, %c0_8], %9 {strides = array<i32>} : memref<1x64x128xf32, #tpu.memory_space<vmem>>, vector<1x64x128xf32>,
    return
  }
  func.func @transform_0(%arg0: i32, %arg1: i32) -> (i32, i32, i32) {
    %c0_i32 = arith.constant 0 : i32
    %c0_i32_0 = arith.constant 0 : i32
    return %arg0, %arg1, %c0_i32 : i32, i32, i32
  }
  func.func @transform_1(%arg0: i32, %arg1: i32) -> (i32, i32) {
    %c0_i32 = arith.constant 0 : i32
    %c0_i32_0 = arith.constant 0 : i32
    %c0_i32_1 = arith.constant 0 : i32
    return %c0_i32, %c0_i32_0 : i32, i32
  }
  func.func @transform_2(%arg0: i32, %arg1: i32) -> (i32, i32) {
    %c0_i32 = arith.constant 0 : i32
    %c0_i32_0 = arith.constant 0 : i32
    %c0_i32_1 = arith.constant 0 : i32
    return %c0_i32, %c0_i32_0 : i32, i32
  }
  func.func @transform_3(%arg0: i32, %arg1: i32) -> (i32, i32, i32) {
    %c0_i32 = arith.constant 0 : i32
    %c0_i32_0 = arith.constant 0 : i32
    return %arg0, %arg1, %c0_i32 : i32, i32, i32
  }
}

module attributes {stable_mosaic.version = 11 : i64} {
  func.func @_conv_matmul_kernel(%arg0: i32, %arg1: i32, %arg2: memref<1x64x36xf32, #tpu.memory_space<vmem>>, %arg3: memref<36x128xf32, #tpu.memory_space<vmem>>, %arg4: memref<1x128xf32, #tpu.memory_space<vmem>>, %arg5: memref<1x64x128xf32, #tpu.memory_space<vmem>>) attributes {dimension_semantics = [#tpu.dimension_semantics<parallel>, #tpu.dimension_semantics<parallel>], iteration_bounds = array<i64: 2, 1>, scalar_prefetch = 0 : i64, scratch_operands = 0 : i64, tpu.core_type = #tpu.core_type<tc>, window_params = [{transform_indices = @transform_0, window_bounds = array<i64: 1, 64, 36>}, {pipeline_mode = #tpu.pipeline_mode<synchronous>, transform_indices = @transform_1, window_bounds = array<i64: 36, 128>}, {pipeline_mode = #tpu.pipeline_mode<synchronous>, transform_indices = @transform_2, window_bounds = array<i64: 1, 128>}, {transform_indices = @transform_3, window_bounds = array<i64: 1, 64, 128>}]} {
    %c0 = arith.constant 0 : index
    %c0_0 = arith.constant 0 : index
    %c0_1 = arith.constant 0 : index
    %0 = vector.load %arg2[%c0, %c0_0, %c0_1] : memref<1x64x36xf32, #tpu.memory_space<vmem>>, vector<1x64x36xf32>
    %1 = vector.shape_cast %0 : vector<1x64x36xf32> to vector<64x36xf32>
    %c0_2 = arith.constant 0 : index
    %c0_3 = arith.constant 0 : index
    %2 = vector.load %arg3[%c0_2, %c0_3] : memref<36x128xf32, #tpu.memory_space<vmem>>, vector<36x128xf32>
    %cst = arith.constant dense<0.000000e+00> : vector<64x128xf32>
    %3 = tpu.matmul %1, %2, %cst {dimension_numbers = #tpu.dot_dimension_numbers<[1], [0], [0], [1], [0, 0, 1, 1], [], []>} : vector<64x36xf32>, vector<36x128xf32>, vector<64x128xf32> -> vector<64x128xf32>
    %c0_4 = arith.constant 0 : index
    %c0_5 = arith.constant 0 : index
    %4 = vector.load %arg4[%c0_4, %c0_5] : memref<1x128xf32, #tpu.memory_space<vmem>>, vector<1x128xf32>
    %5 = vector.broadcast %4 : vector<1x128xf32> to vector<64x128xf32>
    %6 = arith.addf %3, %5 : vector<64x128xf32>
    %c0_6 = arith.constant 0 : index
    %c0_7 = arith.constant 0 : index
    %c0_8 = arith.constant 0 : index
    %7 = vector.load %arg5[%c0_6, %c0_7, %c0_8] : memref<1x64x128xf32, #tpu.memory_space<vmem>>, vector<1x64x128xf32>
    %8 = vector.shape_cast %7 : vector<1x64x128xf32> to vector<64x128xf32>
    %9 = vector.shape_cast %6 : vector<64x128xf32> to vector<1x64x128xf32>
    tpu.vector_store %arg5[%c0_6, %c0_7, %c0_8], %9 {strides = array<i32>} : memref<1x64x128xf32, #tpu.memory_space<vmem>>, vector<1x64x128xf32>,
    return
  }
  func.func @transform_0(%arg0: i32, %arg1: i32) -> (i32, i32, i32) {
    %c0_i32 = arith.constant 0 : i32
    %c0_i32_0 = arith.constant 0 : i32
    return %arg0, %arg1, %c0_i32 : i32, i32, i32
  }
  func.func @transform_1(%arg0: i32, %arg1: i32) -> (i32, i32) {
    %c0_i32 = arith.constant 0 : i32
    %c0_i32_0 = arith.constant 0 : i32
    %c0_i32_1 = arith.constant 0 : i32
    return %c0_i32, %c0_i32_0 : i32, i32
  }
  func.func @transform_2(%arg0: i32, %arg1: i32) -> (i32, i32) {
    %c0_i32 = arith.constant 0 : i32
    %c0_i32_0 = arith.constant 0 : i32
    %c0_i32_1 = arith.constant 0 : i32
    return %c0_i32, %c0_i32_0 : i32, i32
  }
  func.func @transform_3(%arg0: i32, %arg1: i32) -> (i32, i32, i32) {
    %c0_i32 = arith.constant 0 : i32
    %c0_i32_0 = arith.constant 0 : i32
    return %arg0, %arg1, %c0_i32 : i32, i32, i32
  }
}

</mosaic_0001>

<llo_original>
// kernel: tpu_custom_call.1
$region0: #{tpu_custom_call.1}
  #allocation0 [shape = 'u32[]', space=smem, size = 0x4, offset = 0x4, fixed_abs, tag = 'smem constant byte address 0x4 - core index']
  #allocation1 [shape = 'u32[144,128]{1,0:T(1,128)}', space=vmem, size = 0x12000, scoped, tag = 'internal scratch']
  %s0 = inlined_call_operand.vmem [shape: f32[2,64,36], index: 0, kind: input, shape index: {}]
  %s1 = inlined_call_operand.vmem [shape: f32[36,128], index: 1, kind: input, shape index: {}]
  %s2 = inlined_call_operand.vmem [shape: f32[1,128], index: 2, kind: input, shape index: {}]
  %s3 = inlined_call_operand.hbm [shape: f32[2,64,128], index: 3, kind: output, shape index: {}]
  %s4 = sld [smem:[#allocation0]]
  $region45: #{tpu_custom_call.1} parent=0
    _
  %s6 = ssub.s32 1, %s4
  %s7 = scalar_select 0, %s6, %s4
  $region1: #{tpu_custom_call.1} parent=0
    #allocation2 [shape = 'u8[65536]{0}', space=vmem, size = 0x10000, scoped, tag = 'output window, operand 0']
    #allocation3 [shape = 's32[2]{0}', space=sflag, size = 0x8, scoped, tag = 'scoped memory for tpu_custom_call.1']
    %8 = vsyncpa [#allocation3], 0
    %s9 = scalar_lea.sflag [#allocation3], 1
    %10 = vsyncpa %s9, 0
    loop: start=0, step=1, limit=4
    $region2: #{tpu_custom_call.1} parent=1 // loop_pre_header
      _
    $region3: #{tpu_custom_call.1} parent=1 // loop_header
      %s12 = sphi 0, %s16
      %p13 = scmp.ge.s32.totalorder %s12, 4
      %s19 = sphi 0, %s31
      %s20 = sphi 0, %s27
      %s21 = sphi 0, %s19
      %s22 = sphi 0, %s20
      %s23 = sphi 0, %s21
      %s24 = sphi 0, %s22
      %s36 = sphi 0, %s38
      %s39 = sphi 0, %s36
      %s40 = sphi 0, %s39
      %s56 = sphi 0, %s40
      %s60 = sphi 0, %s60
      %s62 = sphi 0, %s60
      %s63 = sphi 0, %s62
      %s77 = sphi 0, %s63
      %s81 = sphi 0, %s81
      %s83 = sphi 0, %s81
      %s84 = sphi 0, %s83
      %s98 = sphi 0, %s84
      %s106 = sphi 0, %s108
      %s109 = sphi 0, %s106
      %s110 = sphi 0, %s109
      %s126 = sphi 0, %s110
    $region4: #{tpu_custom_call.1} parent=1 // loop_header_branch
      %15 = sbr.rel (%p13) target = $region8
    $region5: #{tpu_custom_call.1} parent=1 // loop_body
      %s17 = ssub.s32 %s12, 1
      %s18 = ssub.s32 %s12, 2
      %s25 = sadd.s32 1, %s20
      %p26 = scmp.ge.s32.totalorder %s25, 1
      %s27 = scalar_select %p26, 0, %s25
      %s28 = sadd.s32 1, %s19
      %s29 = scalar_select %p26, %s28, %s19
      %p30 = scmp.ge.s32.totalorder %s29, 2
      %s31 = scalar_select %p30, 0, %s29
      %s32 = ssub.s32 %s19, %s31
      %s33 = ssub.s32 %s20, %s27
      %s34 = sor.u32 %s32, %s33
      %p35 = scmp.eq.s32.totalorder %s34, 0
      %s37 = sadd.s32 %s36, 1
      %s38 = scalar_select %p35, %s36, %s37
      %p41 = pneg %p35
      %p42 = scmp.eq.s32.totalorder %s12, 1
      %p43 = por %p41, %p42
      %p44 = scmp.ne.s32.totalorder %s36, %s39
      %p45 = scmp.eq.s32.totalorder %s12, 0
      %p46 = por %p44, %p45
      %p47 = scmp.ne.s32.totalorder %s36, %s39
      %p48 = scmp.eq.s32.totalorder %s17, 1
      %p49 = por %p47, %p48
      %p50 = scmp.ne.s32.totalorder %s39, %s40
      %p51 = scmp.eq.s32.totalorder %s17, 0
      %p52 = por %p50, %p51
      %p53 = scmp.ne.s32.totalorder %s39, %s40
      %p54 = scmp.eq.s32.totalorder %s18, 1
      %p55 = por %p53, %p54
      %p57 = scmp.ne.s32.totalorder %s40, %s56
      %p58 = scmp.eq.s32.totalorder %s18, 0
      %p59 = por %p57, %p58
      %s61 = sadd.s32 %s60, 1
      %p64 = scmp.eq.s32.totalorder %s12, 1
      %p65 = scmp.ne.s32.totalorder %s60, %s62
      %p66 = scmp.eq.s32.totalorder %s12, 0
      %p67 = por %p65, %p66
      %p68 = scmp.ne.s32.totalorder %s60, %s62
      %p69 = scmp.eq.s32.totalorder %s17, 1
      %p70 = por %p68, %p69
      %p71 = scmp.ne.s32.totalorder %s62, %s63
      %p72 = scmp.eq.s32.totalorder %s17, 0
      %p73 = por %p71, %p72
      %p74 = scmp.ne.s32.totalorder %s62, %s63
      %p75 = scmp.eq.s32.totalorder %s18, 1
      %p76 = por %p74, %p75
      %p78 = scmp.ne.s32.totalorder %s63, %s77
      %p79 = scmp.eq.s32.totalorder %s18, 0
      %p80 = por %p78, %p79
      %s82 = sadd.s32 %s81, 1
      %p85 = scmp.eq.s32.totalorder %s12, 1
      %p86 = scmp.ne.s32.totalorder %s81, %s83
      %p87 = scmp.eq.s32.totalorder %s12, 0
      %p88 = por %p86, %p87
      %p89 = scmp.ne.s32.totalorder %s81, %s83
      %p90 = scmp.eq.s32.totalorder %s17, 1
      %p91 = por %p89, %p90
      %p92 = scmp.ne.s32.totalorder %s83, %s84
      %p93 = scmp.eq.s32.totalorder %s17, 0
      %p94 = por %p92, %p93
      %p95 = scmp.ne.s32.totalorder %s83, %s84
      %p96 = scmp.eq.s32.totalorder %s18, 1
      %p97 = por %p95, %p96
      %p99 = scmp.ne.s32.totalorder %s84, %s98
      %p100 = scmp.eq.s32.totalorder %s18, 0
      %p101 = por %p99, %p100
      %s102 = ssub.s32 %s19, %s31
      %s103 = ssub.s32 %s20, %s27
      %s104 = sor.u32 %s102, %s103
      %p105 = scmp.eq.s32.totalorder %s104, 0
      %s107 = sadd.s32 %s106, 1
      %s108 = scalar_select %p105, %s106, %s107
      %p111 = pneg %p105
      %p112 = scmp.eq.s32.totalorder %s12, 1
      %p113 = por %p111, %p112
      %p114 = scmp.ne.s32.totalorder %s106, %s109
      %p115 = scmp.eq.s32.totalorder %s12, 0
      %p116 = por %p114, %p115
      %p117 = scmp.ne.s32.totalorder %s106, %s109
      %p118 = scmp.eq.s32.totalorder %s17, 1
      %p119 = por %p117, %p118
      %p120 = scmp.ne.s32.totalorder %s109, %s110
      %p121 = scmp.eq.s32.totalorder %s17, 0
      %p122 = por %p120, %p121
      %p123 = scmp.ne.s32.totalorder %s109, %s110
      %p124 = scmp.eq.s32.totalorder %s18, 1
      %p125 = por %p123, %p124
      %p127 = scmp.ne.s32.totalorder %s110, %s126
      %p128 = scmp.eq.s32.totalorder %s18, 0
      %p129 = por %p127, %p128
      %p130 = scmp.le.s32.totalorder 1, %s12
      %p131 = scmp.lt.s32.totalorder %s12, 3
      %p132 = pnand %p130, %p131
      %p133 = pneg %p132
      // Predicated region
      $region9: #{tpu_custom_call.1} parent=5 // pred_check
        _
      $region10: #{tpu_custom_call.1} parent=5 // pred_check_branch
        %135 = sbr.rel (%p132) target = $region12
      $region11: #{tpu_custom_call.1} parent=5 // pred_region
        %s136 = ssub.s32 %s12, 1
        // Predicated region
        $region13: #{tpu_custom_call.1} parent=11 // pred_check
          %p137 = pneg %p73
        $region14: #{tpu_custom_call.1} parent=11 // pred_check_branch
          %139 = sbr.rel (%p137) target = $region16
        $region15: #{tpu_custom_call.1} parent=11 // pred_region
          _
        $region16: #{tpu_custom_call.1} parent=11 // pred_fallthru
          _
        // Predicated region
        $region17: #{tpu_custom_call.1} parent=11 // pred_check
          %p140 = pneg %p94
        $region18: #{tpu_custom_call.1} parent=11 // pred_check_branch
          %142 = sbr.rel (%p140) target = $region20
        $region19: #{tpu_custom_call.1} parent=11 // pred_region
          _
        $region20: #{tpu_custom_call.1} parent=11 // pred_fallthru
          _
      $region12: #{tpu_custom_call.1} parent=5 // pred_fallthru
        _
      %p143 = scmp.lt.s32.totalorder %s12, 2
      // Predicated region
      $region21: #{tpu_custom_call.1} parent=5 // pred_check
        %p144 = pneg %p143
      $region22: #{tpu_custom_call.1} parent=5 // pred_check_branch
        %146 = sbr.rel (%p144) target = $region24
      $region23: #{tpu_custom_call.1} parent=5 // pred_region
        // Predicated region
        $region25: #{tpu_custom_call.1} parent=23 // pred_check
          %p147 = pneg %p46
        $region26: #{tpu_custom_call.1} parent=23 // pred_check_branch
          %149 = sbr.rel (%p147) target = $region28
        $region27: #{tpu_custom_call.1} parent=23 // pred_region
          %s150 = smul.u32 8, %s20
          %p151 = scmp.lt.s32.totalorder %s19, 1
          %s152 = scalar_select %p151, %s19, 1
          %p153 = scmp.lt.s32.totalorder %s150, 7
          %s154 = scalar_select %p153, %s150, 7
          %s155 = smul.addr %s152, 8
          %s156 = sadd.s32 %s154, %s155
          %s157 = smul.addr %s156, 8
          %s158 = scalar_lea.vmem %s0, %s157
          %s159 = smul.u32 8, %s20
        $region28: #{tpu_custom_call.1} parent=23 // pred_fallthru
          _
      $region24: #{tpu_custom_call.1} parent=5 // pred_fallthru
        _
      %p160 = scmp.le.s32.totalorder 1, %s12
      %p161 = scmp.lt.s32.totalorder %s12, 3
      %p162 = pnand %p160, %p161
      %p163 = pneg %p162
      // Predicated region
      $region29: #{tpu_custom_call.1} parent=5 // pred_check
        _
      $region30: #{tpu_custom_call.1} parent=5 // pred_check_branch
        %165 = sbr.rel (%p162) target = $region32
      $region31: #{tpu_custom_call.1} parent=5 // pred_region
        %s166 = ssub.s32 %s12, 1
        %s167 = smul.u32 8, %s22
        %p168 = scmp.lt.s32.totalorder %s21, 1
        %s169 = scalar_select %p168, %s21, 1
        %p170 = scmp.lt.s32.totalorder %s167, 7
        %s171 = scalar_select %p170, %s167, 7
        %s172 = smul.addr %s169, 8
        %s173 = sadd.s32 %s171, %s172
        %s174 = smul.addr %s173, 8
        %s175 = scalar_lea.vmem %s0, %s174
        %p176 = pneg %p52
        %p177 = pneg %p49
        %p178 = pneg %p73
        %p179 = pneg %p70
        %p180 = pneg %p94
        %p181 = pneg %p91
        %p182 = pneg %p122
        %p183 = pneg %p119
        %s184 = sand.u32 %s109, 1
        %s185 = scalar_lea.sflag [#allocation3], %s184
        %s186 = sand.u32 %s109, 1
        %s187 = smul.addr %s186, 64
        %s188 = scalar_lea.vmem [#allocation2], %s187
        %s189 = smul.u32 8, %s22
        %p190 = scmp.lt.s32.totalorder %s21, 1
        %s191 = scalar_select %p190, %s21, 1
        %p192 = scmp.lt.s32.totalorder %s189, 7
        %s193 = scalar_select %p192, %s189, 7
        %s194 = smul.addr %s191, 8
        %s195 = sadd.s32 %s193, %s194
        %s196 = smul.addr %s195, 8
        %s197 = scalar_lea.vmem %s0, %s196
        %s198 = smul.u32 8, %s22
        %s199 = smul.u32 8, %s22
        %v200 = vld [vmem:[%s197] sm:$0xff]
        %v201 = vld [vmem:[%s197 + $0x8] sm:$0xff]
        %v202 = vld [vmem:[%s197 + $0x10] sm:$0xff]
        %v203 = vld [vmem:[%s197 + $0x18] sm:$0xff]
        %v204 = vld [vmem:[%s197 + $0x20] sm:$0xff]
        %v205 = vld [vmem:[%s197 + $0x28] sm:$0xff]
        %v206 = vld [vmem:[%s197 + $0x30] sm:$0xff]
        %v207 = vld [vmem:[%s197 + $0x38] sm:$0xff]
        %v208 = vld [vmem:[%s1] sm:$0xff]
        %v209 = vld [vmem:[%s1 + $0x8] sm:$0xff]
        %v210 = vld [vmem:[%s1 + $0x10] sm:$0xff]
        %v211 = vld [vmem:[%s1 + $0x18] sm:$0xff]
        %v212 = vld [vmem:[%s1 + $0x20] sm:$0xf]
        %v213 = vld [vmem:[%s2] sm:$0x1]
        %v215 = vlaneseq
        %v216 = vshrl.u32 %v215, 7
        %v217 = vsub.s32 0, %v216
        %v218 = vrot.slane %v213, %v217
        %vm220 = vcmask 293888
        %v222 = vsel %vm220, %v200, 0
        %v225 = vsel %vm220, %v201, 0
        %v228 = vsel %vm220, %v202, 0
        %v231 = vsel %vm220, %v203, 0
        %v234 = vsel %vm220, %v204, 0
        %v237 = vsel %vm220, %v205, 0
        %v240 = vsel %vm220, %v206, 0
        %v243 = vsel %vm220, %v207, 0
        %vm245 = vcmask 1043456
        %v247 = vsel %vm245, %v212, 0
        %249 = vmatprep.subr.mxu0 0.0
        %250 = vmatpush1.msra.mxu0 %v208
        %251 = vmatprep.subr.mxu0 0.0
        %252 = vmatpush1.msra.mxu0 %v209
        %253 = vmatprep.subr.mxu0 0.0
        %254 = vmatpush1.msra.mxu0 %v210
        %255 = vmatprep.subr.mxu0 0.0
        %256 = vmatpush1.msra.mxu0 %v211
        %257 = vmatprep.subr.mxu0 0.0
        %258 = vmatpush1.msra.mxu0 %v247
        %259 = vmatprep.subr.mxu0 0.0
        %260 = vmatpush1.msra.mxu0 0.0
        %261 = vmatprep.subr.mxu0 0.0
        %262 = vmatpush1.msra.mxu0 0.0
        %263 = vmatprep.subr.mxu0 0.0
        %264 = vmatpush1.msra.mxu0 0.0
        %265 = vmatprep.subr.mxu0 0.0
        %266 = vmatpush1.msra.mxu0 0.0
        %267 = vmatprep.subr.mxu0 0.0
        %268 = vmatpush1.msra.mxu0 0.0
        %269 = vmatprep.subr.mxu0 0.0
        %270 = vmatpush1.msra.mxu0 0.0
        %271 = vmatprep.subr.mxu0 0.0
        %272 = vmatpush1.msra.mxu0 0.0
        %273 = vmatprep.subr.mxu0 0.0
        %274 = vmatpush1.msra.mxu0 0.0
        %275 = vmatprep.subr.mxu0 0.0
        %276 = vmatpush1.msra.mxu0 0.0
        %277 = vmatprep.subr.mxu0 0.0
        %278 = vmatpush1.msra.mxu0 0.0
        %279 = vmatprep.subr.mxu0 0.0
        %280 = vmatpush1.msra.mxu0 0.0
        %281 = vmatprep.subr.mxu0 0.0
        %282 = vmatpush1.msra.mxu0 0.0
        %283 = vmatprep.subr.mxu0 0.0
        %284 = vmatpush1.msra.mxu0 0.0
        %285 = vmatprep.subr.mxu0 0.0
        %286 = vmatpush1.msra.mxu0 0.0
        %287 = vmatprep.subr.mxu0 0.0
        %288 = vmatpush1.msra.mxu0 0.0
        %289 = vmatprep.subr.mxu0 0.0
        %290 = vmatpush1.msra.mxu0 0.0
        %291 = vmatprep.subr.mxu0 0.0
        %292 = vmatpush1.msra.mxu0 0.0
        %293 = vmatprep.subr.mxu0 0.0
        %294 = vmatpush1.msra.mxu0 0.0
        %295 = vmatprep.subr.mxu0 0.0
        %296 = vmatpush1.msra.mxu0 0.0
        %297 = vmatprep.subr.mxu0 0.0
        %298 = vmatpush1.msra.mxu0 0.0
        %299 = vmatprep.subr.mxu0 0.0
        %300 = vmatpush1.msra.mxu0 0.0
        %301 = vmatprep.subr.mxu0 0.0
        %302 = vmatpush1.msra.mxu0 0.0
        %303 = vmatprep.subr.mxu0 0.0
        %304 = vmatpush1.msra.mxu0 0.0
        %305 = vmatprep.subr.mxu0 0.0
        %306 = vmatpush1.msra.mxu0 0.0
        %307 = vmatprep.subr.mxu0 0.0
        %308 = vmatpush1.msra.mxu0 0.0
        %309 = vmatprep.subr.mxu0 0.0
        %310 = vmatpush1.msra.mxu0 0.0
        %311 = vmatprep.subr.mxu0 0.0
        %312 = vmatpush1.msra.mxu0 0.0
        %313 = vmatprep.mubr.f32.mxu0 0.0
        %314 = vmatmul.mubr.f32.gmra.mrb[0].mxu0 %v222
        %v315 = vpop.f32.mrb[0].mxu0
        %v316 = vadd.f32 %v218, %v315
        %v317 = vpop.f32.mrb[0].mxu0
        %318 = vmatprep.mubr.f32.mxu0 0.0
        %319 = vmatmul.mubr.f32.gmra.mrb[0].mxu0 %v225
        %v320 = vpop.f32.mrb[0].mxu0
        %v321 = vadd.f32 %v218, %v320
        %v322 = vpop.f32.mrb[0].mxu0
        %323 = vmatprep.mubr.f32.mxu0 0.0
        %324 = vmatmul.mubr.f32.gmra.mrb[0].mxu0 %v228
        %v325 = vpop.f32.mrb[0].mxu0
        %v326 = vadd.f32 %v218, %v325
        %v327 = vpop.f32.mrb[0].mxu0
        %328 = vmatprep.mubr.f32.mxu0 0.0
        %329 = vmatmul.mubr.f32.gmra.mrb[0].mxu0 %v231
        %v330 = vpop.f32.mrb[0].mxu0
        %v331 = vadd.f32 %v218, %v330
        %v332 = vpop.f32.mrb[0].mxu0
        %333 = vmatprep.mubr.f32.mxu0 0.0
        %334 = vmatmul.mubr.f32.gmra.mrb[0].mxu0 %v234
        %v335 = vpop.f32.mrb[0].mxu0
        %v336 = vadd.f32 %v218, %v335
        %v337 = vpop.f32.mrb[0].mxu0
        %338 = vmatprep.mubr.f32.mxu0 0.0
        %339 = vmatmul.mubr.f32.gmra.mrb[0].mxu0 %v237
        %v340 = vpop.f32.mrb[0].mxu0
        %v341 = vadd.f32 %v218, %v340
        %v342 = vpop.f32.mrb[0].mxu0
        %343 = vmatprep.mubr.f32.mxu0 0.0
        %344 = vmatmul.mubr.f32.gmra.mrb[0].mxu0 %v240
        %v345 = vpop.f32.mrb[0].mxu0
        %v346 = vadd.f32 %v218, %v345
        %v347 = vpop.f32.mrb[0].mxu0
        %348 = vmatprep.mubr.f32.mxu0 0.0
        %349 = vmatmul.mubr.f32.gmra.mrb[0].mxu0 %v243
        %v350 = vpop.f32.mrb[0].mxu0
        %v351 = vadd.f32 %v218, %v350
        %v352 = vpop.f32.mrb[0].mxu0
        %353 = vdwg.mxu0
        %354 = vst [vmem:[%s188] sm:$0xff] %v316
        %355 = vst [vmem:[%s188 + $0x8] sm:$0xff] %v321
        %356 = vst [vmem:[%s188 + $0x10] sm:$0xff] %v326
        %357 = vst [vmem:[%s188 + $0x18] sm:$0xff] %v331
        %358 = vst [vmem:[%s188 + $0x20] sm:$0xff] %v336
        %359 = vst [vmem:[%s188 + $0x28] sm:$0xff] %v341
        %360 = vst [vmem:[%s188 + $0x30] sm:$0xff] %v346
        %361 = vst [vmem:[%s188 + $0x38] sm:$0xff] %v351
        %s362 = sand.u32 %s109, 1
        %s363 = scalar_lea.sflag [#allocation3], %s362
        %s364 = sand.u32 %s109, 1
        %s365 = smul.addr %s364, 64
        %s366 = scalar_lea.vmem [#allocation2], %s365
        // Predicated region
        $region33: #{tpu_custom_call.1} parent=31 // pred_check
          %p367 = pneg %p119
        $region34: #{tpu_custom_call.1} parent=31 // pred_check_branch
          %369 = sbr.rel (%p367) target = $region36
        $region35: #{tpu_custom_call.1} parent=31 // pred_region
          %s370 = smul.u32 8, %s22
          %s372 = ssub.s32 1024, 1024
          %373 = vsyncadd %s363, %s372
          %s374 = smul.addr %s21, 8
          %s375 = sadd.s32 %s370, %s374
          %s376 = smul.addr %s375, 128
          %s377 = scalar_lea.hbm %s3, %s376
          %s378 = sshll.u32 %s366, 4
          %s379 = int_to_ptr.vmem [resolvable:$true] %s378
          %384 = dma.vmem_to_hbm [thread:$0]  %s379, 1024, %s377, %s363, 128, 128, 8
        $region36: #{tpu_custom_call.1} parent=31 // pred_fallthru
          _
      $region32: #{tpu_custom_call.1} parent=5 // pred_fallthru
        _
      %p385 = scmp.le.s32.totalorder 2, %s12
      // Predicated region
      $region37: #{tpu_custom_call.1} parent=5 // pred_check
        %p386 = pneg %p385
      $region38: #{tpu_custom_call.1} parent=5 // pred_check_branch
        %388 = sbr.rel (%p386) target = $region40
      $region39: #{tpu_custom_call.1} parent=5 // pred_region
        %s389 = ssub.s32 %s12, 2
        // Predicated region
        $region41: #{tpu_custom_call.1} parent=39 // pred_check
          %p390 = pneg %p125
        $region42: #{tpu_custom_call.1} parent=39 // pred_check_branch
          %392 = sbr.rel (%p390) target = $region44
        $region43: #{tpu_custom_call.1} parent=39 // pred_region
          %s393 = sand.u32 %s110, 1
          %s394 = scalar_lea.sflag [#allocation3], %s393
          %s395 = sand.u32 %s110, 1
          %s396 = smul.addr %s395, 64
          %s397 = scalar_lea.vmem [#allocation2], %s396
          %398 = dma.done %s394, 1024
        $region44: #{tpu_custom_call.1} parent=39 // pred_fallthru
          _
      $region40: #{tpu_custom_call.1} parent=5 // pred_fallthru
        _
    $region6: #{tpu_custom_call.1} parent=1 // loop_footer
      %s16 = sadd.s32 1, %s12
    $region7: #{tpu_custom_call.1} parent=1 // loop_footer_branch
      %11 = sbr.rel target = $region3
    $region8: #{tpu_custom_call.1} parent=1 // loop_exit
      _
    %399 = vsyncpa [#allocation3], 1
    %s400 = scalar_lea.sflag [#allocation3], 1
    %401 = vsyncpa %s400, 1

// kernel: tpu_custom_call.1
$region0: #{tpu_custom_call.1}
  #allocation0 [shape = 'u32[]', space=smem, size = 0x4, offset = 0x4, fixed_abs, tag = 'smem constant byte address 0x4 - core index']
  #allocation1 [shape = 'u32[144,128]{1,0:T(1,128)}', space=vmem, size = 0x12000, scoped, tag = 'internal scratch']
  %s0 = inlined_call_operand.vmem [shape: f32[2,64,36], index: 0, kind: input, shape index: {}]
  %s1 = inlined_call_operand.vmem [shape: f32[36,128], index: 1, kind: input, shape index: {}]
  %s2 = inlined_call_operand.vmem [shape: f32[1,128], index: 2, kind: input, shape index: {}]
  %s3 = inlined_call_operand.hbm [shape: f32[2,64,128], index: 3, kind: output, shape index: {}]
  %s4 = sld [smem:[#allocation0]]
  $region45: #{tpu_custom_call.1} parent=0
    _
  %s6 = ssub.s32 1, %s4
  %s7 = scalar_select 0, %s6, %s4
  $region1: #{tpu_custom_call.1} parent=0
    #allocation2 [shape = 'u8[65536]{0}', space=vmem, size = 0x10000, scoped, tag = 'output window, operand 0']
    #allocation3 [shape = 's32[2]{0}', space=sflag, size = 0x8, scoped, tag = 'scoped memory for tpu_custom_call.1']
    %8 = vsyncpa [#allocation3], 0
    %s9 = scalar_lea.sflag [#allocation3], 1
    %10 = vsyncpa %s9, 0
    loop: start=0, step=1, limit=4
    $region2: #{tpu_custom_call.1} parent=1 // loop_pre_header
      _
    $region3: #{tpu_custom_call.1} parent=1 // loop_header
      %s12 = sphi 0, %s16
      %p13 = scmp.ge.s32.totalorder %s12, 4
      %s19 = sphi 0, %s31
      %s20 = sphi 0, %s27
      %s21 = sphi 0, %s19
      %s22 = sphi 0, %s20
      %s23 = sphi 0, %s21
      %s24 = sphi 0, %s22
      %s36 = sphi 0, %s38
      %s39 = sphi 0, %s36
      %s40 = sphi 0, %s39
      %s56 = sphi 0, %s40
      %s60 = sphi 0, %s60
      %s62 = sphi 0, %s60
      %s63 = sphi 0, %s62
      %s77 = sphi 0, %s63
      %s81 = sphi 0, %s81
      %s83 = sphi 0, %s81
      %s84 = sphi 0, %s83
      %s98 = sphi 0, %s84
      %s106 = sphi 0, %s108
      %s109 = sphi 0, %s106
      %s110 = sphi 0, %s109
      %s126 = sphi 0, %s110
    $region4: #{tpu_custom_call.1} parent=1 // loop_header_branch
      %15 = sbr.rel (%p13) target = $region8
    $region5: #{tpu_custom_call.1} parent=1 // loop_body
      %s17 = ssub.s32 %s12, 1
      %s18 = ssub.s32 %s12, 2
      %s25 = sadd.s32 1, %s20
      %p26 = scmp.ge.s32.totalorder %s25, 1
      %s27 = scalar_select %p26, 0, %s25
      %s28 = sadd.s32 1, %s19
      %s29 = scalar_select %p26, %s28, %s19
      %p30 = scmp.ge.s32.totalorder %s29, 2
      %s31 = scalar_select %p30, 0, %s29
      %s32 = ssub.s32 %s19, %s31
      %s33 = ssub.s32 %s20, %s27
      %s34 = sor.u32 %s32, %s33
      %p35 = scmp.eq.s32.totalorder %s34, 0
      %s37 = sadd.s32 %s36, 1
      %s38 = scalar_select %p35, %s36, %s37
      %p41 = pneg %p35
      %p42 = scmp.eq.s32.totalorder %s12, 1
      %p43 = por %p41, %p42
      %p44 = scmp.ne.s32.totalorder %s36, %s39
      %p45 = scmp.eq.s32.totalorder %s12, 0
      %p46 = por %p44, %p45
      %p47 = scmp.ne.s32.totalorder %s36, %s39
      %p48 = scmp.eq.s32.totalorder %s17, 1
      %p49 = por %p47, %p48
      %p50 = scmp.ne.s32.totalorder %s39, %s40
      %p51 = scmp.eq.s32.totalorder %s17, 0
      %p52 = por %p50, %p51
      %p53 = scmp.ne.s32.totalorder %s39, %s40
      %p54 = scmp.eq.s32.totalorder %s18, 1
      %p55 = por %p53, %p54
      %p57 = scmp.ne.s32.totalorder %s40, %s56
      %p58 = scmp.eq.s32.totalorder %s18, 0
      %p59 = por %p57, %p58
      %s61 = sadd.s32 %s60, 1
      %p64 = scmp.eq.s32.totalorder %s12, 1
      %p65 = scmp.ne.s32.totalorder %s60, %s62
      %p66 = scmp.eq.s32.totalorder %s12, 0
      %p67 = por %p65, %p66
      %p68 = scmp.ne.s32.totalorder %s60, %s62
      %p69 = scmp.eq.s32.totalorder %s17, 1
      %p70 = por %p68, %p69
      %p71 = scmp.ne.s32.totalorder %s62, %s63
      %p72 = scmp.eq.s32.totalorder %s17, 0
      %p73 = por %p71, %p72
      %p74 = scmp.ne.s32.totalorder %s62, %s63
      %p75 = scmp.eq.s32.totalorder %s18, 1
      %p76 = por %p74, %p75
      %p78 = scmp.ne.s32.totalorder %s63, %s77
      %p79 = scmp.eq.s32.totalorder %s18, 0
      %p80 = por %p78, %p79
      %s82 = sadd.s32 %s81, 1
      %p85 = scmp.eq.s32.totalorder %s12, 1
      %p86 = scmp.ne.s32.totalorder %s81, %s83
      %p87 = scmp.eq.s32.totalorder %s12, 0
      %p88 = por %p86, %p87
      %p89 = scmp.ne.s32.totalorder %s81, %s83
      %p90 = scmp.eq.s32.totalorder %s17, 1
      %p91 = por %p89, %p90
      %p92 = scmp.ne.s32.totalorder %s83, %s84
      %p93 = scmp.eq.s32.totalorder %s17, 0
      %p94 = por %p92, %p93
      %p95 = scmp.ne.s32.totalorder %s83, %s84
      %p96 = scmp.eq.s32.totalorder %s18, 1
      %p97 = por %p95, %p96
      %p99 = scmp.ne.s32.totalorder %s84, %s98
      %p100 = scmp.eq.s32.totalorder %s18, 0
      %p101 = por %p99, %p100
      %s102 = ssub.s32 %s19, %s31
      %s103 = ssub.s32 %s20, %s27
      %s104 = sor.u32 %s102, %s103
      %p105 = scmp.eq.s32.totalorder %s104, 0
      %s107 = sadd.s32 %s106, 1
      %s108 = scalar_select %p105, %s106, %s107
      %p111 = pneg %p105
      %p112 = scmp.eq.s32.totalorder %s12, 1
      %p113 = por %p111, %p112
      %p114 = scmp.ne.s32.totalorder %s106, %s109
      %p115 = scmp.eq.s32.totalorder %s12, 0
      %p116 = por %p114, %p115
      %p117 = scmp.ne.s32.totalorder %s106, %s109
      %p118 = scmp.eq.s32.totalorder %s17, 1
      %p119 = por %p117, %p118
      %p120 = scmp.ne.s32.totalorder %s109, %s110
      %p121 = scmp.eq.s32.totalorder %s17, 0
      %p122 = por %p120, %p121
      %p123 = scmp.ne.s32.totalorder %s109, %s110
      %p124 = scmp.eq.s32.totalorder %s18, 1
      %p125 = por %p123, %p124
      %p127 = scmp.ne.s32.totalorder %s110, %s126
      %p128 = scmp.eq.s32.totalorder %s18, 0
      %p129 = por %p127, %p128
      %p130 = scmp.le.s32.totalorder 1, %s12
      %p131 = scmp.lt.s32.totalorder %s12, 3
      %p132 = pnand %p130, %p131
      %p133 = pneg %p132
      // Predicated region
      $region9: #{tpu_custom_call.1} parent=5 // pred_check
        _
      $region10: #{tpu_custom_call.1} parent=5 // pred_check_branch
        %135 = sbr.rel (%p132) target = $region12
      $region11: #{tpu_custom_call.1} parent=5 // pred_region
        %s136 = ssub.s32 %s12, 1
        // Predicated region
        $region13: #{tpu_custom_call.1} parent=11 // pred_check
          %p137 = pneg %p73
        $region14: #{tpu_custom_call.1} parent=11 // pred_check_branch
          %139 = sbr.rel (%p137) target = $region16
        $region15: #{tpu_custom_call.1} parent=11 // pred_region
          _
        $region16: #{tpu_custom_call.1} parent=11 // pred_fallthru
          _
        // Predicated region
        $region17: #{tpu_custom_call.1} parent=11 // pred_check
          %p140 = pneg %p94
        $region18: #{tpu_custom_call.1} parent=11 // pred_check_branch
          %142 = sbr.rel (%p140) target = $region20
        $region19: #{tpu_custom_call.1} parent=11 // pred_region
          _
        $region20: #{tpu_custom_call.1} parent=11 // pred_fallthru
          _
      $region12: #{tpu_custom_call.1} parent=5 // pred_fallthru
        _
      %p143 = scmp.lt.s32.totalorder %s12, 2
      // Predicated region
      $region21: #{tpu_custom_call.1} parent=5 // pred_check
        %p144 = pneg %p143
      $region22: #{tpu_custom_call.1} parent=5 // pred_check_branch
        %146 = sbr.rel (%p144) target = $region24
      $region23: #{tpu_custom_call.1} parent=5 // pred_region
        // Predicated region
        $region25: #{tpu_custom_call.1} parent=23 // pred_check
          %p147 = pneg %p46
        $region26: #{tpu_custom_call.1} parent=23 // pred_check_branch
          %149 = sbr.rel (%p147) target = $region28
        $region27: #{tpu_custom_call.1} parent=23 // pred_region
          %s150 = smul.u32 8, %s20
          %p151 = scmp.lt.s32.totalorder %s19, 1
          %s152 = scalar_select %p151, %s19, 1
          %p153 = scmp.lt.s32.totalorder %s150, 7
          %s154 = scalar_select %p153, %s150, 7
          %s155 = smul.addr %s152, 8
          %s156 = sadd.s32 %s154, %s155
          %s157 = smul.addr %s156, 8
          %s158 = scalar_lea.vmem %s0, %s157
          %s159 = smul.u32 8, %s20
        $region28: #{tpu_custom_call.1} parent=23 // pred_fallthru
          _
      $region24: #{tpu_custom_call.1} parent=5 // pred_fallthru
        _
      %p160 = scmp.le.s32.totalorder 1, %s12
      %p161 = scmp.lt.s32.totalorder %s12, 3
      %p162 = pnand %p160, %p161
      %p163 = pneg %p162
      // Predicated region
      $region29: #{tpu_custom_call.1} parent=5 // pred_check
        _
      $region30: #{tpu_custom_call.1} parent=5 // pred_check_branch
        %165 = sbr.rel (%p162) target = $region32
      $region31: #{tpu_custom_call.1} parent=5 // pred_region
        %s166 = ssub.s32 %s12, 1
        %s167 = smul.u32 8, %s22
        %p168 = scmp.lt.s32.totalorder %s21, 1
        %s169 = scalar_select %p168, %s21, 1
        %p170 = scmp.lt.s32.totalorder %s167, 7
        %s171 = scalar_select %p170, %s167, 7
        %s172 = smul.addr %s169, 8
        %s173 = sadd.s32 %s171, %s172
        %s174 = smul.addr %s173, 8
        %s175 = scalar_lea.vmem %s0, %s174
        %p176 = pneg %p52
        %p177 = pneg %p49
        %p178 = pneg %p73
        %p179 = pneg %p70
        %p180 = pneg %p94
        %p181 = pneg %p91
        %p182 = pneg %p122
        %p183 = pneg %p119
        %s184 = sand.u32 %s109, 1
        %s185 = scalar_lea.sflag [#allocation3], %s184
        %s186 = sand.u32 %s109, 1
        %s187 = smul.addr %s186, 64
        %s188 = scalar_lea.vmem [#allocation2], %s187
        %s189 = smul.u32 8, %s22
        %p190 = scmp.lt.s32.totalorder %s21, 1
        %s191 = scalar_select %p190, %s21, 1
        %p192 = scmp.lt.s32.totalorder %s189, 7
        %s193 = scalar_select %p192, %s189, 7
        %s194 = smul.addr %s191, 8
        %s195 = sadd.s32 %s193, %s194
        %s196 = smul.addr %s195, 8
        %s197 = scalar_lea.vmem %s0, %s196
        %s198 = smul.u32 8, %s22
        %s199 = smul.u32 8, %s22
        %v200 = vld [vmem:[%s197] sm:$0xff]
        %v201 = vld [vmem:[%s197 + $0x8] sm:$0xff]
        %v202 = vld [vmem:[%s197 + $0x10] sm:$0xff]
        %v203 = vld [vmem:[%s197 + $0x18] sm:$0xff]
        %v204 = vld [vmem:[%s197 + $0x20] sm:$0xff]
        %v205 = vld [vmem:[%s197 + $0x28] sm:$0xff]
        %v206 = vld [vmem:[%s197 + $0x30] sm:$0xff]
        %v207 = vld [vmem:[%s197 + $0x38] sm:$0xff]
        %v208 = vld [vmem:[%s1] sm:$0xff]
        %v209 = vld [vmem:[%s1 + $0x8] sm:$0xff]
        %v210 = vld [vmem:[%s1 + $0x10] sm:$0xff]
        %v211 = vld [vmem:[%s1 + $0x18] sm:$0xff]
        %v212 = vld [vmem:[%s1 + $0x20] sm:$0xf]
        %v213 = vld [vmem:[%s2] sm:$0x1]
        %v215 = vlaneseq
        %v216 = vshrl.u32 %v215, 7
        %v217 = vsub.s32 0, %v216
        %v218 = vrot.slane %v213, %v217
        %vm220 = vcmask 293888
        %v222 = vsel %vm220, %v200, 0
        %v225 = vsel %vm220, %v201, 0
        %v228 = vsel %vm220, %v202, 0
        %v231 = vsel %vm220, %v203, 0
        %v234 = vsel %vm220, %v204, 0
        %v237 = vsel %vm220, %v205, 0
        %v240 = vsel %vm220, %v206, 0
        %v243 = vsel %vm220, %v207, 0
        %vm245 = vcmask 1043456
        %v247 = vsel %vm245, %v212, 0
        %249 = vmatprep.subr.mxu0 0.0
        %250 = vmatpush1.msra.mxu0 %v208
        %251 = vmatprep.subr.mxu0 0.0
        %252 = vmatpush1.msra.mxu0 %v209
        %253 = vmatprep.subr.mxu0 0.0
        %254 = vmatpush1.msra.mxu0 %v210
        %255 = vmatprep.subr.mxu0 0.0
        %256 = vmatpush1.msra.mxu0 %v211
        %257 = vmatprep.subr.mxu0 0.0
        %258 = vmatpush1.msra.mxu0 %v247
        %259 = vmatprep.subr.mxu0 0.0
        %260 = vmatpush1.msra.mxu0 0.0
        %261 = vmatprep.subr.mxu0 0.0
        %262 = vmatpush1.msra.mxu0 0.0
        %263 = vmatprep.subr.mxu0 0.0
        %264 = vmatpush1.msra.mxu0 0.0
        %265 = vmatprep.subr.mxu0 0.0
        %266 = vmatpush1.msra.mxu0 0.0
        %267 = vmatprep.subr.mxu0 0.0
        %268 = vmatpush1.msra.mxu0 0.0
        %269 = vmatprep.subr.mxu0 0.0
        %270 = vmatpush1.msra.mxu0 0.0
        %271 = vmatprep.subr.mxu0 0.0
        %272 = vmatpush1.msra.mxu0 0.0
        %273 = vmatprep.subr.mxu0 0.0
        %274 = vmatpush1.msra.mxu0 0.0
        %275 = vmatprep.subr.mxu0 0.0
        %276 = vmatpush1.msra.mxu0 0.0
        %277 = vmatprep.subr.mxu0 0.0
        %278 = vmatpush1.msra.mxu0 0.0
        %279 = vmatprep.subr.mxu0 0.0
        %280 = vmatpush1.msra.mxu0 0.0
        %281 = vmatprep.subr.mxu0 0.0
        %282 = vmatpush1.msra.mxu0 0.0
        %283 = vmatprep.subr.mxu0 0.0
        %284 = vmatpush1.msra.mxu0 0.0
        %285 = vmatprep.subr.mxu0 0.0
        %286 = vmatpush1.msra.mxu0 0.0
        %287 = vmatprep.subr.mxu0 0.0
        %288 = vmatpush1.msra.mxu0 0.0
        %289 = vmatprep.subr.mxu0 0.0
        %290 = vmatpush1.msra.mxu0 0.0
        %291 = vmatprep.subr.mxu0 0.0
        %292 = vmatpush1.msra.mxu0 0.0
        %293 = vmatprep.subr.mxu0 0.0
        %294 = vmatpush1.msra.mxu0 0.0
        %295 = vmatprep.subr.mxu0 0.0
        %296 = vmatpush1.msra.mxu0 0.0
        %297 = vmatprep.subr.mxu0 0.0
        %298 = vmatpush1.msra.mxu0 0.0
        %299 = vmatprep.subr.mxu0 0.0
        %300 = vmatpush1.msra.mxu0 0.0
        %301 = vmatprep.subr.mxu0 0.0
        %302 = vmatpush1.msra.mxu0 0.0
        %303 = vmatprep.subr.mxu0 0.0
        %304 = vmatpush1.msra.mxu0 0.0
        %305 = vmatprep.subr.mxu0 0.0
        %306 = vmatpush1.msra.mxu0 0.0
        %307 = vmatprep.subr.mxu0 0.0
        %308 = vmatpush1.msra.mxu0 0.0
        %309 = vmatprep.subr.mxu0 0.0
        %310 = vmatpush1.msra.mxu0 0.0
        %311 = vmatprep.subr.mxu0 0.0
        %312 = vmatpush1.msra.mxu0 0.0
        %313 = vmatprep.mubr.f32.mxu0 0.0
        %314 = vmatmul.mubr.f32.gmra.mrb[0].mxu0 %v222
        %v315 = vpop.f32.mrb[0].mxu0
        %v316 = vadd.f32 %v218, %v315
        %v317 = vpop.f32.mrb[0].mxu0
        %318 = vmatprep.mubr.f32.mxu0 0.0
        %319 = vmatmul.mubr.f32.gmra.mrb[0].mxu0 %v225
        %v320 = vpop.f32.mrb[0].mxu0
        %v321 = vadd.f32 %v218, %v320
        %v322 = vpop.f32.mrb[0].mxu0
        %323 = vmatprep.mubr.f32.mxu0 0.0
        %324 = vmatmul.mubr.f32.gmra.mrb[0].mxu0 %v228
        %v325 = vpop.f32.mrb[0].mxu0
        %v326 = vadd.f32 %v218, %v325
        %v327 = vpop.f32.mrb[0].mxu0
        %328 = vmatprep.mubr.f32.mxu0 0.0
        %329 = vmatmul.mubr.f32.gmra.mrb[0].mxu0 %v231
        %v330 = vpop.f32.mrb[0].mxu0
        %v331 = vadd.f32 %v218, %v330
        %v332 = vpop.f32.mrb[0].mxu0
        %333 = vmatprep.mubr.f32.mxu0 0.0
        %334 = vmatmul.mubr.f32.gmra.mrb[0].mxu0 %v234
        %v335 = vpop.f32.mrb[0].mxu0
        %v336 = vadd.f32 %v218, %v335
        %v337 = vpop.f32.mrb[0].mxu0
        %338 = vmatprep.mubr.f32.mxu0 0.0
        %339 = vmatmul.mubr.f32.gmra.mrb[0].mxu0 %v237
        %v340 = vpop.f32.mrb[0].mxu0
        %v341 = vadd.f32 %v218, %v340
        %v342 = vpop.f32.mrb[0].mxu0
        %343 = vmatprep.mubr.f32.mxu0 0.0
        %344 = vmatmul.mubr.f32.gmra.mrb[0].mxu0 %v240
        %v345 = vpop.f32.mrb[0].mxu0
        %v346 = vadd.f32 %v218, %v345
        %v347 = vpop.f32.mrb[0].mxu0
        %348 = vmatprep.mubr.f32.mxu0 0.0
        %349 = vmatmul.mubr.f32.gmra.mrb[0].mxu0 %v243
        %v350 = vpop.f32.mrb[0].mxu0
        %v351 = vadd.f32 %v218, %v350
        %v352 = vpop.f32.mrb[0].mxu0
        %353 = vdwg.mxu0
        %354 = vst [vmem:[%s188] sm:$0xff] %v316
        %355 = vst [vmem:[%s188 + $0x8] sm:$0xff] %v321
        %356 = vst [vmem:[%s188 + $0x10] sm:$0xff] %v326
        %357 = vst [vmem:[%s188 + $0x18] sm:$0xff] %v331
        %358 = vst [vmem:[%s188 + $0x20] sm:$0xff] %v336
        %359 = vst [vmem:[%s188 + $0x28] sm:$0xff] %v341
        %360 = vst [vmem:[%s188 + $0x30] sm:$0xff] %v346
        %361 = vst [vmem:[%s188 + $0x38] sm:$0xff] %v351
        %s362 = sand.u32 %s109, 1
        %s363 = scalar_lea.sflag [#allocation3], %s362
        %s364 = sand.u32 %s109, 1
        %s365 = smul.addr %s364, 64
        %s366 = scalar_lea.vmem [#allocation2], %s365
        // Predicated region
        $region33: #{tpu_custom_call.1} parent=31 // pred_check
          %p367 = pneg %p119
        $region34: #{tpu_custom_call.1} parent=31 // pred_check_branch
          %369 = sbr.rel (%p367) target = $region36
        $region35: #{tpu_custom_call.1} parent=31 // pred_region
          %s370 = smul.u32 8, %s22
          %s372 = ssub.s32 1024, 1024
          %373 = vsyncadd %s363, %s372
          %s374 = smul.addr %s21, 8
          %s375 = sadd.s32 %s370, %s374
          %s376 = smul.addr %s375, 128
          %s377 = scalar_lea.hbm %s3, %s376
          %s378 = sshll.u32 %s366, 4
          %s379 = int_to_ptr.vmem [resolvable:$true] %s378
          %384 = dma.vmem_to_hbm [thread:$0]  %s379, 1024, %s377, %s363, 128, 128, 8
        $region36: #{tpu_custom_call.1} parent=31 // pred_fallthru
          _
      $region32: #{tpu_custom_call.1} parent=5 // pred_fallthru
        _
      %p385 = scmp.le.s32.totalorder 2, %s12
      // Predicated region
      $region37: #{tpu_custom_call.1} parent=5 // pred_check
        %p386 = pneg %p385
      $region38: #{tpu_custom_call.1} parent=5 // pred_check_branch
        %388 = sbr.rel (%p386) target = $region40
      $region39: #{tpu_custom_call.1} parent=5 // pred_region
        %s389 = ssub.s32 %s12, 2
        // Predicated region
        $region41: #{tpu_custom_call.1} parent=39 // pred_check
          %p390 = pneg %p125
        $region42: #{tpu_custom_call.1} parent=39 // pred_check_branch
          %392 = sbr.rel (%p390) target = $region44
        $region43: #{tpu_custom_call.1} parent=39 // pred_region
          %s393 = sand.u32 %s110, 1
          %s394 = scalar_lea.sflag [#allocation3], %s393
          %s395 = sand.u32 %s110, 1
          %s396 = smul.addr %s395, 64
          %s397 = scalar_lea.vmem [#allocation2], %s396
          %398 = dma.done %s394, 1024
        $region44: #{tpu_custom_call.1} parent=39 // pred_fallthru
          _
      $region40: #{tpu_custom_call.1} parent=5 // pred_fallthru
        _
    $region6: #{tpu_custom_call.1} parent=1 // loop_footer
      %s16 = sadd.s32 1, %s12
    $region7: #{tpu_custom_call.1} parent=1 // loop_footer_branch
      %11 = sbr.rel target = $region3
    $region8: #{tpu_custom_call.1} parent=1 // loop_exit
      _
    %399 = vsyncpa [#allocation3], 1
    %s400 = scalar_lea.sflag [#allocation3], 1
    %401 = vsyncpa %s400, 1

</llo_original>
